<compile_context>
chip_gen: v6e
topology: v6e:2x2x1
jax: 0.10.0
libtpu: 0.0.40
codegen_flags: <defaults>
</compile_context>

<pallas_src>
import functools

import jax
import jax.numpy as jnp
from jax import lax
from jax.experimental import pallas as pl
from jax.experimental.pallas import tpu as pltpu


# ---------------------------------------------------------------------------
# Fused kernel (one grid step = b_tile batch elements):
#   A_sum  = sum_c A[b, c]                       (channel fold BEFORE perm)
#   m_h    = P_h @ (A_sum @ (P_h^T @ (P_h @ f)))
#   logits = concat_h(m_h) @ W + bias
#   out    = log_softmax(logits, axis=-1)        (lane-dense (1, n*out) row)
# ---------------------------------------------------------------------------
def _fused_cocn_kernel(perm_ref, adj_ref, f_ref, w_ref, b_ref, o_ref,
                       *, compute_dtype):
    """perm_ref: (b_tile, h, n, n)  f32  soft permutations
       adj_ref : (b_tile, e, n, n)  f32  edge-feature adjacency channels
       f_ref   : (b_tile, n, d)     f32  node features
       w_ref   : (h*d, out)         f32  head-projection weight
       b_ref   : (1, out)           f32  head-projection bias
       o_ref   : (b_tile, 1, n*out) f32  lane-dense log-softmax output"""
    cd = compute_dtype
    b_tile = perm_ref.shape[0]
    h = perm_ref.shape[1]
    n = perm_ref.shape[-1]
    d = f_ref.shape[-1]
    out_dim = w_ref.shape[-1]

    def mm(a, b, contract):
        # MXU matmul (operands already in the compute dtype), f32 accumulation.
        # Transposed contractions go through dimension_numbers (no explicit .T).
        return lax.dot_general(a, b, dimension_numbers=(contract, ((), ())),
                               preferred_element_type=jnp.float32)

    # Weight / bias prep once per grid step (shared by the whole batch tile).
    w_c = w_ref[...].astype(cd)                               # (h*d, out)
    bias_full = jnp.broadcast_to(b_ref[...], (n, out_dim))    # hoisted broadcast

    # TODO(synk): for large b_tile switch to lax.fori_loop(..., unroll=True);
    # a static Python loop is fine for the small tiles used here.
    for bt in range(b_tile):
        # Edge-channel fold before permuting (f32 VPU sum of the raw input),
        # then a single cast to the MXU operand dtype.
        a_sum = jnp.sum(adj_ref[bt], axis=0).astype(cd)       # (n, n)

        p = perm_ref[bt].astype(cd)                           # (h, n, n), one cast
        f_c = f_ref[bt].astype(cd)                            # (n, d)

        # Stage 1: all heads stacked along M -> one (h*n, n) @ (n, d) matmul.
        # (sublane-axis concat; rows are 8-aligned so this is cheap layout work)
        p_stack = jnp.concatenate([p[head] for head in range(h)], axis=0)
        fp = mm(p_stack, f_c, ((1,), (0,))).astype(cd)        # (h*n, d)

        # Stage 2 (per head): g_h = P_h^T @ (P_h f).  The ((0,),(0,))
        # contraction feeds the MXU with a transposed LHS; verify with
        # pl.lower_as_mlir that no vxpose copy appears if n grows.
        g_heads = [mm(p[head], fp[head * n:(head + 1) * n, :], ((0,), (0,)))
                   for head in range(h)]
        g = jnp.concatenate(g_heads, axis=-1).astype(cd)      # (n, h*d) lane-concat

        # Stage 3: one wide matmul over all heads: (n, n) @ (n, h*d).
        u = mm(a_sum, g, ((1,), (0,))).astype(cd)             # (n, h*d)

        # Stage 4 (per head): m_h = P_h @ u_h.
        m_heads = [mm(p[head], u[:, head * d:(head + 1) * d], ((1,), (0,)))
                   for head in range(h)]
        m_cat = jnp.concatenate(m_heads, axis=-1).astype(cd)  # (n, h*d)

        # Stage 5: single head projection concat_h(m_h) @ W  (K = h*d).
        logits = mm(m_cat, w_c, ((1,), (0,))) + bias_full     # (n, out) f32

        # log_softmax kept in f32 (v5e VPU has no bf16 ALU).
        mx = jnp.max(logits, axis=-1, keepdims=True)
        lse = jnp.log(jnp.sum(jnp.exp(logits - mx), axis=-1, keepdims=True)) + mx
        res = logits - lse                                    # (n, out)

        # Lane-dense store: pack (n, out) into a single (1, n*out) row
        # (= 128 lanes at the demo shapes) so the HBM write is an unmasked
        # full-width vst instead of n masked out_dim-lane stores.  Built with
        # a lane-axis concat instead of a generic reshape (safe lowering).
        row = jnp.concatenate(jnp.split(res, n, axis=0), axis=1)  # (1, n*out)
        o_ref[bt] = row


def fused_sparse_cocn(perm, adj, features, w_out, b_out, *,
                      compute_dtype=jnp.bfloat16, b_tile=None):
    """perm: (b, h, n, n) f32, adj: (b, e, n, n) f32, features: (b, n, d) f32.
       Returns log-softmax node outputs as a lane-dense (b, 1, n*out_dim) f32
       slab (row-major reshape to (b*n, out_dim) in the caller)."""
    b_s, h, n, _ = perm.shape
    e_feat = adj.shape[1]
    d = features.shape[-1]
    out_dim = w_out.shape[-1]

    if b_tile is None:
        # Amortize the ~0.35 us/grid-step overhead while keeping >=2 grid
        # steps when the batch allows it (v7x 2-TC split).
        b_tile = b_s if b_s < 2 else max(1, min(8, b_s // 2))
    while b_s % b_tile:          # keep the grid exact
        b_tile -= 1
    num_steps = b_s // b_tile

    # Deeper input pipelining only pays off once the grid has a few steps.
    pm = dict(pipeline_mode=pl.Buffered(3)) if num_steps > 2 else {}

    flops_per_b = (2 * n * n * h * d * 4          # stages 1-4
                   + 2 * n * h * d * out_dim      # head projection
                   + e_feat * n * n)              # channel fold
    cost = pl.CostEstimate(
        flops=int(b_s * flops_per_b),
        transcendentals=int(b_s * n * (out_dim + 1)),   # exp + log per row
        bytes_accessed=int(4 * (b_s * h * n * n + b_s * e_feat * n * n
                                + b_s * n * d + h * d * out_dim + out_dim
                                + b_s * n * out_dim)))

    kernel = functools.partial(_fused_cocn_kernel, compute_dtype=compute_dtype)
    return pl.pallas_call(
        kernel,
        out_shape=jax.ShapeDtypeStruct((b_s, 1, n * out_dim), jnp.float32),
        grid=(num_steps,),
        in_specs=[
            pl.BlockSpec((b_tile, h, n, n), lambda i: (i, 0, 0, 0), **pm),
            pl.BlockSpec((b_tile, e_feat, n, n), lambda i: (i, 0, 0, 0), **pm),
            pl.BlockSpec((b_tile, n, d), lambda i: (i, 0, 0), **pm),
            pl.BlockSpec((h * d, out_dim), lambda i: (0, 0)),
            pl.BlockSpec((1, out_dim), lambda i: (0, 0)),
        ],
        out_specs=pl.BlockSpec((b_tile, 1, n * out_dim), lambda i: (i, 0, 0)),
        compiler_params=pltpu.CompilerParams(
            # Verify in xprof that this shards the batch grid across the 2
            # v7x TensorCores; if not, switch to pltpu.CORE_PARALLEL.
            dimension_semantics=("parallel",),
            # Tiny blocks here; re-derive for real shapes (v7x: 64 MiB VMEM,
            # adj block is double-buffered -> ~2*e*n^2*4 bytes).
            vmem_limit_bytes=32 * 1024 * 1024),
        cost_estimate=cost,
    )(perm, adj, features, w_out, b_out)          # all f32 — no boundary casts


# ---------------------------------------------------------------------------
# SparseCoCN forward (permutation construction in plain JAX, hot path fused
# into the single Pallas kernel above)
# ---------------------------------------------------------------------------
@functools.partial(jax.jit, static_argnames=("compute_dtype",))
def sparse_cocn_forward(params, features, adj, *, compute_dtype=jnp.bfloat16):
    b_s, n, d = features.shape
    out_dim = params["w_out"].shape[-1]

    # ranking (synthetic stand-in): per-node, per-head scores (f32).
    scores = jnp.einsum("bnd,dh->bnh", features, params["w_rank"])

    # perm_gen (synthetic stand-in, sub_size=1): hard ordering by score, soft
    # sigmoid values.  Built in f32; the kernel casts to bf16 in VMEM.
    vals = jax.nn.sigmoid(scores)                              # (b, n, h)
    order = jnp.argsort(-scores, axis=1)                       # (b, rank, h)
    onehot = jax.nn.one_hot(order, n, dtype=jnp.float32)       # (b, rank, h, node)
    onehot = jnp.transpose(onehot, (0, 2, 1, 3))               # (b, h, rank, node)
    vals_bh = jnp.transpose(vals, (0, 2, 1))                   # (b, h, node)
    perm = onehot * vals_bh[:, :, None, :]                     # (b, h, n, n)
    # TODO(synk): at realistic n, pass `order`/`vals` via scalar prefetch and
    # implement P@x / P^T@x as vals-scaled row gathers instead of materializing
    # the dense (b, h, n, n) soft permutation and 4 of the 5 matmuls per head.

    # sparse_perm_2D + cocn message passing + head projection + log_softmax:
    # one fused Pallas kernel; output is a lane-dense (b, 1, n*out_dim) slab.
    out = fused_sparse_cocn(perm, adj, features,
                            params["w_out"], params["b_out"],
                            compute_dtype=compute_dtype)
    return out.reshape(b_s * n, out_dim)                       # pure reshape


# Pure-f32 JAX reference in the unfused form (per-channel permuted adjacency,
# as sparse_perm_2D would produce densely) — validates the channel fold and
# the bf16 MXU path numerically.
def reference_forward(params, features, adj):
    b_s, n, d = features.shape
    h = params["w_rank"].shape[-1]
    out_dim = params["w_out"].shape[-1]

    scores = jnp.einsum("bnd,dh->bnh", features, params["w_rank"])
    vals = jax.nn.sigmoid(scores)
    order = jnp.argsort(-scores, axis=1)
    onehot = jax.nn.one_hot(order, n, dtype=jnp.float32)
    onehot = jnp.transpose(onehot, (0, 2, 1, 3))
    vals_bh = jnp.transpose(vals, (0, 2, 1))
    perm = onehot * vals_bh[:, :, None, :]                     # (b, h, n, n)

    padj = jnp.einsum("bhij,bcjk,bhlk->bhcil", perm, adj, perm)  # P A_c P^T
    pf = jnp.einsum("bhij,bjd->bhid", perm, features)            # P f
    msg = jnp.einsum("bhcil,bhld->bhid", padj, pf)               # sum_c,l
    m_cat = jnp.transpose(msg, (0, 2, 1, 3)).reshape(b_s, n, h * d)
    logits = jnp.einsum("bnk,ko->bno", m_cat, params["w_out"]) + params["b_out"]
    ref = jax.nn.log_softmax(logits, axis=-1)
    return ref.reshape(b_s * n, out_dim)


if __name__ == "__main__":
    b_s, n, d, h, e_feat, out_dim = 2, 16, 8, 2, 4, 8

    key = jax.random.PRNGKey(0)
    k1, k2, k3, k4, k5 = jax.random.split(key, 5)

    features = jax.random.normal(k1, (b_s, n, d), dtype=jnp.float32)
    adj_raw = jax.random.uniform(k2, (b_s, e_feat, n, n), dtype=jnp.float32)
    adj = jnp.where(adj_raw > 0.7, adj_raw, 0.0)   # sparse-ish dense adjacency

    params = {
        "w_rank": 0.5 * jax.random.normal(k3, (d, h), dtype=jnp.float32),
        "w_out": 0.1 * jax.random.normal(k4, (h * d, out_dim), dtype=jnp.float32),
        "b_out": 0.1 * jax.random.normal(k5, (1, out_dim), dtype=jnp.float32),
    }

    out = sparse_cocn_forward(params, features, adj)
    jax.block_until_ready(out)

    assert out.shape == (b_s * n, out_dim)
    assert bool(jnp.all(jnp.isfinite(out)))

    # log_softmax rows must normalize: logsumexp over classes == 0 (f32 in-kernel).
    lse = jax.scipy.special.logsumexp(out, axis=-1)
    assert bool(jnp.allclose(lse, 0.0, atol=1e-4))

    # Numerical fidelity vs. a pure-f32 unfused reference (bf16 MXU operands,
    # f32 accumulation -> ~1e-2-level agreement expected).
    ref = reference_forward(params, features, adj)
    assert bool(jnp.allclose(out, ref, atol=1e-1)), float(jnp.max(jnp.abs(out - ref)))

    print("KERNEL_OK")
</pallas_src>

<mosaic_0001>
module attributes {stable_mosaic.version = 11 : i64} {
  func.func @_fused_cocn_kernel(%arg0: i32, %arg1: memref<1x2x16x16xf32, #tpu.memory_space<vmem>>, %arg2: memref<1x4x16x16xf32, #tpu.memory_space<vmem>>, %arg3: memref<1x16x8xf32, #tpu.memory_space<vmem>>, %arg4: memref<16x8xf32, #tpu.memory_space<vmem>>, %arg5: memref<1x8xf32, #tpu.memory_space<vmem>>, %arg6: memref<1x1x128xf32, #tpu.memory_space<vmem>>) attributes {dimension_semantics = [#tpu.dimension_semantics<parallel>], iteration_bounds = array<i64: 2>, scalar_prefetch = 0 : i64, scratch_operands = 0 : i64, tpu.core_type = #tpu.core_type<tc>, window_params = [{transform_indices = @transform_0, window_bounds = array<i64: 1, 2, 16, 16>}, {transform_indices = @transform_1, window_bounds = array<i64: 1, 4, 16, 16>}, {transform_indices = @transform_2, window_bounds = array<i64: 1, 16, 8>}, {pipeline_mode = #tpu.pipeline_mode<synchronous>, transform_indices = @transform_3, window_bounds = array<i64: 16, 8>}, {pipeline_mode = #tpu.pipeline_mode<synchronous>, transform_indices = @transform_4, window_bounds = array<i64: 1, 8>}, {transform_indices = @transform_5, window_bounds = array<i64: 1, 1, 128>}]} {
    %c0 = arith.constant 0 : index
    %c0_0 = arith.constant 0 : index
    %0 = vector.load %arg4[%c0, %c0_0] : memref<16x8xf32, #tpu.memory_space<vmem>>, vector<16x8xf32>
    %1 = arith.truncf %0 : vector<16x8xf32> to vector<16x8xbf16>
    %c0_1 = arith.constant 0 : index
    %c0_2 = arith.constant 0 : index
    %2 = vector.load %arg5[%c0_1, %c0_2] : memref<1x8xf32, #tpu.memory_space<vmem>>, vector<1x8xf32>
    %3 = vector.shape_cast %2 : vector<1x8xf32> to vector<1x8xf32>
    %4 = vector.broadcast %3 : vector<1x8xf32> to vector<16x8xf32>
    %c0_3 = arith.constant 0 : index
    %c0_4 = arith.constant 0 : index
    %c0_5 = arith.constant 0 : index
    %c0_6 = arith.constant 0 : index
    %5 = vector.load %arg2[%c0_3, %c0_4, %c0_5, %c0_6] : memref<1x4x16x16xf32, #tpu.memory_space<vmem>>, vector<1x4x16x16xf32>
    %6 = vector.shape_cast %5 : vector<1x4x16x16xf32> to vector<4x16x16xf32>
    %cst = arith.constant dense<0.000000e+00> : vector<16x16xf32>
    %7 = vector.multi_reduction <add>, %6, %cst [0] : vector<4x16x16xf32> to vector<16x16xf32>
    %8 = arith.truncf %7 : vector<16x16xf32> to vector<16x16xbf16>
    %c0_7 = arith.constant 0 : index
    %c0_8 = arith.constant 0 : index
    %c0_9 = arith.constant 0 : index
    %c0_10 = arith.constant 0 : index
    %9 = vector.load %arg1[%c0_7, %c0_8, %c0_9, %c0_10] : memref<1x2x16x16xf32, #tpu.memory_space<vmem>>, vector<1x2x16x16xf32>
    %10 = vector.shape_cast %9 : vector<1x2x16x16xf32> to vector<2x16x16xf32>
    %11 = arith.truncf %10 : vector<2x16x16xf32> to vector<2x16x16xbf16>
    %c0_11 = arith.constant 0 : index
    %c0_12 = arith.constant 0 : index
    %c0_13 = arith.constant 0 : index
    %12 = vector.load %arg3[%c0_11, %c0_12, %c0_13] : memref<1x16x8xf32, #tpu.memory_space<vmem>>, vector<1x16x8xf32>
    %13 = vector.shape_cast %12 : vector<1x16x8xf32> to vector<16x8xf32>
    %14 = arith.truncf %13 : vector<16x8xf32> to vector<16x8xbf16>
    %15 = vector.extract_strided_slice %11 {offsets = [0, 0, 0], sizes = [1, 16, 16], strides = [1, 1, 1]} : vector<2x16x16xbf16> to vector<1x16x16xbf16>
    %16 = vector.shape_cast %15 : vector<1x16x16xbf16> to vector<16x16xbf16>
    %17 = vector.extract_strided_slice %11 {offsets = [1, 0, 0], sizes = [1, 16, 16], strides = [1, 1, 1]} : vector<2x16x16xbf16> to vector<1x16x16xbf16>
    %18 = vector.shape_cast %17 : vector<1x16x16xbf16> to vector<16x16xbf16>
    %19 = tpu.concatenate %16, %18 in 0 : vector<16x16xbf16>, vector<16x16xbf16> -> vector<32x16xbf16>
    %cst_14 = arith.constant dense<0.000000e+00> : vector<32x8xf32>
    %20 = tpu.matmul %19, %14, %cst_14 {dimension_numbers = #tpu.dot_dimension_numbers<[1], [0], [0], [1], [0, 0, 1, 1], [], []>} : vector<32x16xbf16>, vector<16x8xbf16>, vector<32x8xf32> -> vector<32x8xf32>
    %21 = arith.truncf %20 : vector<32x8xf32> to vector<32x8xbf16>
    %22 = vector.extract_strided_slice %11 {offsets = [0, 0, 0], sizes = [1, 16, 16], strides = [1, 1, 1]} : vector<2x16x16xbf16> to vector<1x16x16xbf16>
    %23 = vector.shape_cast %22 : vector<1x16x16xbf16> to vector<16x16xbf16>
    %24 = vector.extract_strided_slice %21 {offsets = [0, 0], sizes = [16, 8], strides = [1, 1]} : vector<32x8xbf16> to vector<16x8xbf16>
    %cst_15 = arith.constant dense<0.000000e+00> : vector<16x8xf32>
    %25 = tpu.matmul %23, %24, %cst_15 {dimension_numbers = #tpu.dot_dimension_numbers<[0], [0], [1], [1], [0, 1, 1, 1], [], []>} : vector<16x16xbf16>, vector<16x8xbf16>, vector<16x8xf32> -> vector<16x8xf32>
    %26 = vector.extract_strided_slice %11 {offsets = [1, 0, 0], sizes = [1, 16, 16], strides = [1, 1, 1]} : vector<2x16x16xbf16> to vector<1x16x16xbf16>
    %27 = vector.shape_cast %26 : vector<1x16x16xbf16> to vector<16x16xbf16>
    %28 = vector.extract_strided_slice %21 {offsets = [16, 0], sizes = [16, 8], strides = [1, 1]} : vector<32x8xbf16> to vector<16x8xbf16>
    %cst_16 = arith.constant dense<0.000000e+00> : vector<16x8xf32>
    %29 = tpu.matmul %27, %28, %cst_16 {dimension_numbers = #tpu.dot_dimension_numbers<[0], [0], [1], [1], [0, 1, 1, 1], [], []>} : vector<16x16xbf16>, vector<16x8xbf16>, vector<16x8xf32> -> vector<16x8xf32>
    %30 = tpu.concatenate %25, %29 in 1 : vector<16x8xf32>, vector<16x8xf32> -> vector<16x16xf32>
    %31 = arith.truncf %30 : vector<16x16xf32> to vector<16x16xbf16>
    %cst_17 = arith.constant dense<0.000000e+00> : vector<16x16xf32>
    %32 = tpu.matmul %8, %31, %cst_17 {dimension_numbers = #tpu.dot_dimension_numbers<[1], [0], [0], [1], [0, 0, 1, 1], [], []>} : vector<16x16xbf16>, vector<16x16xbf16>, vector<16x16xf32> -> vector<16x16xf32>
    %33 = arith.truncf %32 : vector<16x16xf32> to vector<16x16xbf16>
    %34 = vector.extract_strided_slice %11 {offsets = [0, 0, 0], sizes = [1, 16, 16], strides = [1, 1, 1]} : vector<2x16x16xbf16> to vector<1x16x16xbf16>
    %35 = vector.shape_cast %34 : vector<1x16x16xbf16> to vector<16x16xbf16>
    %36 = vector.extract_strided_slice %33 {offsets = [0, 0], sizes = [16, 8], strides = [1, 1]} : vector<16x16xbf16> to vector<16x8xbf16>
    %cst_18 = arith.constant dense<0.000000e+00> : vector<16x8xf32>
    %37 = tpu.matmul %35, %36, %cst_18 {dimension_numbers = #tpu.dot_dimension_numbers<[1], [0], [0], [1], [0, 0, 1, 1], [], []>} : vector<16x16xbf16>, vector<16x8xbf16>, vector<16x8xf32> -> vector<16x8xf32>
    %38 = vector.extract_strided_slice %11 {offsets = [1, 0, 0], sizes = [1, 16, 16], strides = [1, 1, 1]} : vector<2x16x16xbf16> to vector<1x16x16xbf16>
    %39 = vector.shape_cast %38 : vector<1x16x16xbf16> to vector<16x16xbf16>
    %40 = vector.extract_strided_slice %33 {offsets = [0, 8], sizes = [16, 8], strides = [1, 1]} : vector<16x16xbf16> to vector<16x8xbf16>
    %cst_19 = arith.constant dense<0.000000e+00> : vector<16x8xf32>
    %41 = tpu.matmul %39, %40, %cst_19 {dimension_numbers = #tpu.dot_dimension_numbers<[1], [0], [0], [1], [0, 0, 1, 1], [], []>} : vector<16x16xbf16>, vector<16x8xbf16>, vector<16x8xf32> -> vector<16x8xf32>
    %42 = tpu.concatenate %37, %41 in 1 : vector<16x8xf32>, vector<16x8xf32> -> vector<16x16xf32>
    %43 = arith.truncf %42 : vector<16x16xf32> to vector<16x16xbf16>
    %cst_20 = arith.constant dense<0.000000e+00> : vector<16x8xf32>
    %44 = tpu.matmul %43, %1, %cst_20 {dimension_numbers = #tpu.dot_dimension_numbers<[1], [0], [0], [1], [0, 0, 1, 1], [], []>} : vector<16x16xbf16>, vector<16x8xbf16>, vector<16x8xf32> -> vector<16x8xf32>
    %45 = arith.addf %44, %4 : vector<16x8xf32>
    %cst_21 = arith.constant dense<0xFF800000> : vector<16xf32>
    %46 = vector.multi_reduction <maximumf>, %45, %cst_21 [1] : vector<16x8xf32> to vector<16xf32>
    %47 = vector.shape_cast %46 : vector<16xf32> to vector<16x1xf32>
    %48 = vector.broadcast %47 : vector<16x1xf32> to vector<16x8xf32>
    %49 = arith.subf %45, %48 : vector<16x8xf32>
    %50 = math.exp %49 : vector<16x8xf32>
    %cst_22 = arith.constant dense<0.000000e+00> : vector<16xf32>
    %51 = vector.multi_reduction <add>, %50, %cst_22 [1] : vector<16x8xf32> to vector<16xf32>
    %52 = vector.shape_cast %51 : vector<16xf32> to vector<16x1xf32>
    %53 = math.log %52 : vector<16x1xf32>
    %54 = arith.addf %53, %47 : vector<16x1xf32>
    %55 = vector.broadcast %54 : vector<16x1xf32> to vector<16x8xf32>
    %56 = arith.subf %45, %55 : vector<16x8xf32>
    %57 = vector.extract_strided_slice %56 {offsets = [0, 0], sizes = [1, 8], strides = [1, 1]} : vector<16x8xf32> to vector<1x8xf32>
    %58 = vector.extract_strided_slice %56 {offsets = [1, 0], sizes = [1, 8], strides = [1, 1]} : vector<16x8xf32> to vector<1x8xf32>
    %59 = vector.extract_strided_slice %56 {offsets = [2, 0], sizes = [1, 8], strides = [1, 1]} : vector<16x8xf32> to vector<1x8xf32>
    %60 = vector.extract_strided_slice %56 {offsets = [3, 0], sizes = [1, 8], strides = [1, 1]} : vector<16x8xf32> to vector<1x8xf32>
    %61 = vector.extract_strided_slice %56 {offsets = [4, 0], sizes = [1, 8], strides = [1, 1]} : vector<16x8xf32> to vector<1x8xf32>
    %62 = vector.extract_strided_slice %56 {offsets = [5, 0], sizes = [1, 8], strides = [1, 1]} : vector<16x8xf32> to vector<1x8xf32>
    %63 = vector.extract_strided_slice %56 {offsets = [6, 0], sizes = [1, 8], strides = [1, 1]} : vector<16x8xf32> to vector<1x8xf32>
    %64 = vector.extract_strided_slice %56 {offsets = [7, 0], sizes = [1, 8], strides = [1, 1]} : vector<16x8xf32> to vector<1x8xf32>
    %65 = vector.extract_strided_slice %56 {offsets = [8, 0], sizes = [1, 8], strides = [1, 1]} : vector<16x8xf32> to vector<1x8xf32>
    %66 = vector.extract_strided_slice %56 {offsets = [9, 0], sizes = [1, 8], strides = [1, 1]} : vector<16x8xf32> to vector<1x8xf32>
    %67 = vector.extract_strided_slice %56 {offsets = [10, 0], sizes = [1, 8], strides = [1, 1]} : vector<16x8xf32> to vector<1x8xf32>
    %68 = vector.extract_strided_slice %56 {offsets = [11, 0], sizes = [1, 8], strides = [1, 1]} : vector<16x8xf32> to vector<1x8xf32>
    %69 = vector.extract_strided_slice %56 {offsets = [12, 0], sizes = [1, 8], strides = [1, 1]} : vector<16x8xf32> to vector<1x8xf32>
    %70 = vector.extract_strided_slice %56 {offsets = [13, 0], sizes = [1, 8], strides = [1, 1]} : vector<16x8xf32> to vector<1x8xf32>
    %71 = vector.extract_strided_slice %56 {offsets = [14, 0], sizes = [1, 8], strides = [1, 1]} : vector<16x8xf32> to vector<1x8xf32>
    %72 = vector.extract_strided_slice %56 {offsets = [15, 0], sizes = [1, 8], strides = [1, 1]} : vector<16x8xf32> to vector<1x8xf32>
    %73 = tpu.concatenate %57, %58, %59, %60, %61, %62, %63, %64, %65, %66, %67, %68, %69, %70, %71, %72 in 1 : vector<1x8xf32>, vector<1x8xf32>, vector<1x8xf32>, vector<1x8xf32>, vector<1x8xf32>, vector<1x8xf32>, vector<1x8xf32>, vector<1x8xf32>, vector<1x8xf32>, vector<1x8xf32>, vector<1x8xf32>, vector<1x8xf32>, vector<1x8xf32>, vector<1x8xf32>, vector<1x8xf32>, vector<1x8xf32> -> vector<1x128xf32>
    %c0_23 = arith.constant 0 : index
    %c0_24 = arith.constant 0 : index
    %c0_25 = arith.constant 0 : index
    %74 = vector.load %arg6[%c0_23, %c0_24, %c0_25] : memref<1x1x128xf32, #tpu.memory_space<vmem>>, vector<1x1x128xf32>
    %75 = vector.shape_cast %74 : vector<1x1x128xf32> to vector<1x128xf32>
    %76 = vector.shape_cast %73 : vector<1x128xf32> to vector<1x1x128xf32>
    tpu.vector_store %arg6[%c0_23, %c0_24, %c0_25], %76 {strides = array<i32>} : memref<1x1x128xf32, #tpu.memory_space<vmem>>, vector<1x1x128xf32>,
    return
  }
  func.func @transform_0(%arg0: i32) -> (i32, i32, i32, i32) {
    %c0_i32 = arith.constant 0 : i32
    %c0_i32_0 = arith.constant 0 : i32
    %c0_i32_1 = arith.constant 0 : i32
    %c0_i32_2 = arith.constant 0 : i32
    return %arg0, %c0_i32, %c0_i32_0, %c0_i32_1 : i32, i32, i32, i32
  }
  func.func @transform_1(%arg0: i32) -> (i32, i32, i32, i32) {
    %c0_i32 = arith.constant 0 : i32
    %c0_i32_0 = arith.constant 0 : i32
    %c0_i32_1 = arith.constant 0 : i32
    %c0_i32_2 = arith.constant 0 : i32
    return %arg0, %c0_i32, %c0_i32_0, %c0_i32_1 : i32, i32, i32, i32
  }
  func.func @transform_2(%arg0: i32) -> (i32, i32, i32) {
    %c0_i32 = arith.constant 0 : i32
    %c0_i32_0 = arith.constant 0 : i32
    %c0_i32_1 = arith.constant 0 : i32
    return %arg0, %c0_i32, %c0_i32_0 : i32, i32, i32
  }
  func.func @transform_3(%arg0: i32) -> (i32, i32) {
    %c0_i32 = arith.constant 0 : i32
    %c0_i32_0 = arith.constant 0 : i32
    %c0_i32_1 = arith.constant 0 : i32
    return %c0_i32, %c0_i32_0 : i32, i32
  }
  func.func @transform_4(%arg0: i32) -> (i32, i32) {
    %c0_i32 = arith.constant 0 : i32
    %c0_i32_0 = arith.constant 0 : i32
    %c0_i32_1 = arith.constant 0 : i32
    return %c0_i32, %c0_i32_0 : i32, i32
  }
  func.func @transform_5(%arg0: i32) -> (i32, i32, i32) {
    %c0_i32 = arith.constant 0 : i32
    %c0_i32_0 = arith.constant 0 : i32
    %c0_i32_1 = arith.constant 0 : i32
    return %arg0, %c0_i32, %c0_i32_0 : i32, i32, i32
  }
}

</mosaic_0001>

<llo_original>
// kernel: sparse_cocn_forward.1
$region0: #{sparse_cocn_forward.1}
  #allocation0 [shape = 'u32[]', space=smem, size = 0x4, offset = 0x4, fixed_abs, tag = 'smem constant byte address 0x4 - core index']
  #allocation1 [shape = 'u32[144,128]{1,0:T(1,128)}', space=vmem, size = 0x12000, scoped, tag = 'internal scratch']
  %s0 = inlined_call_operand.vmem [shape: f32[2,2,16,16], index: 0, kind: input, shape index: {}]
  %s1 = inlined_call_operand.vmem [shape: f32[2,4,16,16], index: 1, kind: input, shape index: {}]
  %s2 = inlined_call_operand.vmem [shape: f32[2,16,8], index: 2, kind: input, shape index: {}]
  %s3 = inlined_call_operand.vmem [shape: f32[16,8], index: 3, kind: input, shape index: {}]
  %s4 = inlined_call_operand.vmem [shape: f32[1,8], index: 4, kind: input, shape index: {}]
  %s5 = inlined_call_operand.vmem [shape: f32[2,1,128], index: 5, kind: output, shape index: {}]
  %s6 = sld [smem:[#allocation0]]
  $region53: #{sparse_cocn_forward.1} parent=0
    _
  %s8 = ssub.s32 1, %s6
  %s9 = scalar_select 0, %s8, %s6
  loop: start=0, step=1, limit=4
  $region2: #{sparse_cocn_forward.1} parent=0 // loop_pre_header
    _
  $region3: #{sparse_cocn_forward.1} parent=0 // loop_header
    %s11 = sphi 0, %s15
    %p12 = scmp.ge.s32.totalorder %s11, 4
    %s21 = sphi 0, %s23
    %s24 = sphi 0, %s21
    %s25 = sphi 0, %s24
    %s41 = sphi 0, %s25
    %s47 = sphi 0, %s49
    %s50 = sphi 0, %s47
    %s51 = sphi 0, %s50
    %s67 = sphi 0, %s51
    %s73 = sphi 0, %s75
    %s76 = sphi 0, %s73
    %s77 = sphi 0, %s76
    %s93 = sphi 0, %s77
    %s97 = sphi 0, %s97
    %s99 = sphi 0, %s97
    %s100 = sphi 0, %s99
    %s114 = sphi 0, %s100
    %s118 = sphi 0, %s118
    %s120 = sphi 0, %s118
    %s121 = sphi 0, %s120
    %s135 = sphi 0, %s121
    %s141 = sphi 0, %s143
    %s144 = sphi 0, %s141
    %s145 = sphi 0, %s144
    %s161 = sphi 0, %s145
  $region4: #{sparse_cocn_forward.1} parent=0 // loop_header_branch
    %14 = sbr.rel (%p12) target = $region8
  $region5: #{sparse_cocn_forward.1} parent=0 // loop_body
    %s16 = ssub.s32 %s11, 1
    %s17 = ssub.s32 %s11, 2
    %s18 = sadd.s32 %s11, 1
    %s19 = ssub.s32 %s11, %s18
    %p20 = scmp.eq.s32.totalorder %s19, 0
    %s22 = sadd.s32 %s21, 1
    %s23 = scalar_select %p20, %s21, %s22
    %p26 = pneg %p20
    %p27 = scmp.eq.s32.totalorder %s11, 1
    %p28 = por %p26, %p27
    %p29 = scmp.ne.s32.totalorder %s21, %s24
    %p30 = scmp.eq.s32.totalorder %s11, 0
    %p31 = por %p29, %p30
    %p32 = scmp.ne.s32.totalorder %s21, %s24
    %p33 = scmp.eq.s32.totalorder %s16, 1
    %p34 = por %p32, %p33
    %p35 = scmp.ne.s32.totalorder %s24, %s25
    %p36 = scmp.eq.s32.totalorder %s16, 0
    %p37 = por %p35, %p36
    %p38 = scmp.ne.s32.totalorder %s24, %s25
    %p39 = scmp.eq.s32.totalorder %s17, 1
    %p40 = por %p38, %p39
    %p42 = scmp.ne.s32.totalorder %s25, %s41
    %p43 = scmp.eq.s32.totalorder %s17, 0
    %p44 = por %p42, %p43
    %s45 = ssub.s32 %s11, %s18
    %p46 = scmp.eq.s32.totalorder %s45, 0
    %s48 = sadd.s32 %s47, 1
    %s49 = scalar_select %p46, %s47, %s48
    %p52 = pneg %p46
    %p53 = scmp.eq.s32.totalorder %s11, 1
    %p54 = por %p52, %p53
    %p55 = scmp.ne.s32.totalorder %s47, %s50
    %p56 = scmp.eq.s32.totalorder %s11, 0
    %p57 = por %p55, %p56
    %p58 = scmp.ne.s32.totalorder %s47, %s50
    %p59 = scmp.eq.s32.totalorder %s16, 1
    %p60 = por %p58, %p59
    %p61 = scmp.ne.s32.totalorder %s50, %s51
    %p62 = scmp.eq.s32.totalorder %s16, 0
    %p63 = por %p61, %p62
    %p64 = scmp.ne.s32.totalorder %s50, %s51
    %p65 = scmp.eq.s32.totalorder %s17, 1
    %p66 = por %p64, %p65
    %p68 = scmp.ne.s32.totalorder %s51, %s67
    %p69 = scmp.eq.s32.totalorder %s17, 0
    %p70 = por %p68, %p69
    %s71 = ssub.s32 %s11, %s18
    %p72 = scmp.eq.s32.totalorder %s71, 0
    %s74 = sadd.s32 %s73, 1
    %s75 = scalar_select %p72, %s73, %s74
    %p78 = pneg %p72
    %p79 = scmp.eq.s32.totalorder %s11, 1
    %p80 = por %p78, %p79
    %p81 = scmp.ne.s32.totalorder %s73, %s76
    %p82 = scmp.eq.s32.totalorder %s11, 0
    %p83 = por %p81, %p82
    %p84 = scmp.ne.s32.totalorder %s73, %s76
    %p85 = scmp.eq.s32.totalorder %s16, 1
    %p86 = por %p84, %p85
    %p87 = scmp.ne.s32.totalorder %s76, %s77
    %p88 = scmp.eq.s32.totalorder %s16, 0
    %p89 = por %p87, %p88
    %p90 = scmp.ne.s32.totalorder %s76, %s77
    %p91 = scmp.eq.s32.totalorder %s17, 1
    %p92 = por %p90, %p91
    %p94 = scmp.ne.s32.totalorder %s77, %s93
    %p95 = scmp.eq.s32.totalorder %s17, 0
    %p96 = por %p94, %p95
    %s98 = sadd.s32 %s97, 1
    %p101 = scmp.eq.s32.totalorder %s11, 1
    %p102 = scmp.ne.s32.totalorder %s97, %s99
    %p103 = scmp.eq.s32.totalorder %s11, 0
    %p104 = por %p102, %p103
    %p105 = scmp.ne.s32.totalorder %s97, %s99
    %p106 = scmp.eq.s32.totalorder %s16, 1
    %p107 = por %p105, %p106
    %p108 = scmp.ne.s32.totalorder %s99, %s100
    %p109 = scmp.eq.s32.totalorder %s16, 0
    %p110 = por %p108, %p109
    %p111 = scmp.ne.s32.totalorder %s99, %s100
    %p112 = scmp.eq.s32.totalorder %s17, 1
    %p113 = por %p111, %p112
    %p115 = scmp.ne.s32.totalorder %s100, %s114
    %p116 = scmp.eq.s32.totalorder %s17, 0
    %p117 = por %p115, %p116
    %s119 = sadd.s32 %s118, 1
    %p122 = scmp.eq.s32.totalorder %s11, 1
    %p123 = scmp.ne.s32.totalorder %s118, %s120
    %p124 = scmp.eq.s32.totalorder %s11, 0
    %p125 = por %p123, %p124
    %p126 = scmp.ne.s32.totalorder %s118, %s120
    %p127 = scmp.eq.s32.totalorder %s16, 1
    %p128 = por %p126, %p127
    %p129 = scmp.ne.s32.totalorder %s120, %s121
    %p130 = scmp.eq.s32.totalorder %s16, 0
    %p131 = por %p129, %p130
    %p132 = scmp.ne.s32.totalorder %s120, %s121
    %p133 = scmp.eq.s32.totalorder %s17, 1
    %p134 = por %p132, %p133
    %p136 = scmp.ne.s32.totalorder %s121, %s135
    %p137 = scmp.eq.s32.totalorder %s17, 0
    %p138 = por %p136, %p137
    %s139 = ssub.s32 %s11, %s18
    %p140 = scmp.eq.s32.totalorder %s139, 0
    %s142 = sadd.s32 %s141, 1
    %s143 = scalar_select %p140, %s141, %s142
    %p146 = pneg %p140
    %p147 = scmp.eq.s32.totalorder %s11, 1
    %p148 = por %p146, %p147
    %p149 = scmp.ne.s32.totalorder %s141, %s144
    %p150 = scmp.eq.s32.totalorder %s11, 0
    %p151 = por %p149, %p150
    %p152 = scmp.ne.s32.totalorder %s141, %s144
    %p153 = scmp.eq.s32.totalorder %s16, 1
    %p154 = por %p152, %p153
    %p155 = scmp.ne.s32.totalorder %s144, %s145
    %p156 = scmp.eq.s32.totalorder %s16, 0
    %p157 = por %p155, %p156
    %p158 = scmp.ne.s32.totalorder %s144, %s145
    %p159 = scmp.eq.s32.totalorder %s17, 1
    %p160 = por %p158, %p159
    %p162 = scmp.ne.s32.totalorder %s145, %s161
    %p163 = scmp.eq.s32.totalorder %s17, 0
    %p164 = por %p162, %p163
    %p165 = scmp.le.s32.totalorder 1, %s11
    %p166 = scmp.lt.s32.totalorder %s11, 3
    %p167 = pnand %p165, %p166
    %p168 = pneg %p167
    // Predicated region
    $region9: #{sparse_cocn_forward.1} parent=5 // pred_check
      _
    $region10: #{sparse_cocn_forward.1} parent=5 // pred_check_branch
      %170 = sbr.rel (%p167) target = $region12
    $region11: #{sparse_cocn_forward.1} parent=5 // pred_region
      %s171 = ssub.s32 %s11, 1
      // Predicated region
      $region13: #{sparse_cocn_forward.1} parent=11 // pred_check
        %p172 = pneg %p110
      $region14: #{sparse_cocn_forward.1} parent=11 // pred_check_branch
        %174 = sbr.rel (%p172) target = $region16
      $region15: #{sparse_cocn_forward.1} parent=11 // pred_region
        _
      $region16: #{sparse_cocn_forward.1} parent=11 // pred_fallthru
        _
      // Predicated region
      $region17: #{sparse_cocn_forward.1} parent=11 // pred_check
        %p175 = pneg %p131
      $region18: #{sparse_cocn_forward.1} parent=11 // pred_check_branch
        %177 = sbr.rel (%p175) target = $region20
      $region19: #{sparse_cocn_forward.1} parent=11 // pred_region
        _
      $region20: #{sparse_cocn_forward.1} parent=11 // pred_fallthru
        _
    $region12: #{sparse_cocn_forward.1} parent=5 // pred_fallthru
      _
    %p178 = scmp.lt.s32.totalorder %s11, 2
    // Predicated region
    $region21: #{sparse_cocn_forward.1} parent=5 // pred_check
      %p179 = pneg %p178
    $region22: #{sparse_cocn_forward.1} parent=5 // pred_check_branch
      %181 = sbr.rel (%p179) target = $region24
    $region23: #{sparse_cocn_forward.1} parent=5 // pred_region
      // Predicated region
      $region25: #{sparse_cocn_forward.1} parent=23 // pred_check
        %p182 = pneg %p31
      $region26: #{sparse_cocn_forward.1} parent=23 // pred_check_branch
        %184 = sbr.rel (%p182) target = $region28
      $region27: #{sparse_cocn_forward.1} parent=23 // pred_region
        %p185 = scmp.lt.s32.totalorder %s11, 1
        %s186 = scalar_select %p185, %s11, 1
        %s187 = smul.addr %s186, 4
        %s188 = smul.addr %s187, 8
        %s189 = scalar_lea.vmem %s0, %s188
      $region28: #{sparse_cocn_forward.1} parent=23 // pred_fallthru
        _
      // Predicated region
      $region29: #{sparse_cocn_forward.1} parent=23 // pred_check
        %p190 = pneg %p57
      $region30: #{sparse_cocn_forward.1} parent=23 // pred_check_branch
        %192 = sbr.rel (%p190) target = $region32
      $region31: #{sparse_cocn_forward.1} parent=23 // pred_region
        %p193 = scmp.lt.s32.totalorder %s11, 1
        %s194 = scalar_select %p193, %s11, 1
        %s195 = smul.addr %s194, 8
        %s196 = smul.addr %s195, 8
        %s197 = scalar_lea.vmem %s1, %s196
      $region32: #{sparse_cocn_forward.1} parent=23 // pred_fallthru
        _
      // Predicated region
      $region33: #{sparse_cocn_forward.1} parent=23 // pred_check
        %p198 = pneg %p83
      $region34: #{sparse_cocn_forward.1} parent=23 // pred_check_branch
        %200 = sbr.rel (%p198) target = $region36
      $region35: #{sparse_cocn_forward.1} parent=23 // pred_region
        %p201 = scmp.lt.s32.totalorder %s11, 1
        %s202 = scalar_select %p201, %s11, 1
        %s203 = smul.addr %s202, 2
        %s204 = smul.addr %s203, 8
        %s205 = scalar_lea.vmem %s2, %s204
      $region36: #{sparse_cocn_forward.1} parent=23 // pred_fallthru
        _
    $region24: #{sparse_cocn_forward.1} parent=5 // pred_fallthru
      _
    %p206 = scmp.le.s32.totalorder 1, %s11
    %p207 = scmp.lt.s32.totalorder %s11, 3
    %p208 = pnand %p206, %p207
    %p209 = pneg %p208
    // Predicated region
    $region37: #{sparse_cocn_forward.1} parent=5 // pred_check
      _
    $region38: #{sparse_cocn_forward.1} parent=5 // pred_check_branch
      %211 = sbr.rel (%p208) target = $region40
    $region39: #{sparse_cocn_forward.1} parent=5 // pred_region
      %s212 = ssub.s32 %s11, 1
      %p213 = scmp.lt.s32.totalorder %s16, 1
      %s214 = scalar_select %p213, %s16, 1
      %s215 = smul.addr %s214, 4
      %s216 = smul.addr %s215, 8
      %s217 = scalar_lea.vmem %s0, %s216
      %p218 = pneg %p37
      %p219 = pneg %p34
      %p220 = scmp.lt.s32.totalorder %s16, 1
      %s221 = scalar_select %p220, %s16, 1
      %s222 = smul.addr %s221, 8
      %s223 = smul.addr %s222, 8
      %s224 = scalar_lea.vmem %s1, %s223
      %p225 = pneg %p63
      %p226 = pneg %p60
      %p227 = scmp.lt.s32.totalorder %s16, 1
      %s228 = scalar_select %p227, %s16, 1
      %s229 = smul.addr %s228, 2
      %s230 = smul.addr %s229, 8
      %s231 = scalar_lea.vmem %s2, %s230
      %p232 = pneg %p89
      %p233 = pneg %p86
      %p234 = pneg %p110
      %p235 = pneg %p107
      %p236 = pneg %p131
      %p237 = pneg %p128
      %p238 = pneg %p157
      %p239 = pneg %p154
      %p240 = scmp.lt.s32.totalorder %s16, 1
      %s241 = scalar_select %p240, %s16, 1
      %s242 = scalar_lea.vmem %s5, %s241
      %p243 = scmp.lt.s32.totalorder %s16, 1
      %s244 = scalar_select %p243, %s16, 1
      %s245 = smul.addr %s244, 4
      %s246 = smul.addr %s245, 8
      %s247 = scalar_lea.vmem %s0, %s246
      %p248 = scmp.lt.s32.totalorder %s16, 1
      %s249 = scalar_select %p248, %s16, 1
      %s250 = smul.addr %s249, 8
      %s251 = smul.addr %s250, 8
      %s252 = scalar_lea.vmem %s1, %s251
      %p253 = scmp.lt.s32.totalorder %s16, 1
      %s254 = scalar_select %p253, %s16, 1
      %s255 = smul.addr %s254, 2
      %s256 = smul.addr %s255, 8
      %s257 = scalar_lea.vmem %s2, %s256
      %p258 = scmp.lt.s32.totalorder %s16, 1
      %s259 = scalar_select %p258, %s16, 1
      %s260 = scalar_lea.vmem %s5, %s259
      %v262 = vld [vmem:[%s3] sm:$0xff]
      %v263 = vld [vmem:[%s3 + $0x8] sm:$0xff]
      %v264 = vpack.c.bf16 %v263, %v262
      %v265 = vld [vmem:[%s4] sm:$0x1]
      %v267 = vlaneseq
      %v268 = vshrl.u32 %v267, 7
      %v269 = vsub.s32 0, %v268
      %v270 = vrot.slane %v265, %v269
      %v272 = vld [vmem:[%s252] sm:$0xff]
      %v273 = vld [vmem:[%s252 + $0x8] sm:$0xff]
      %v274 = vld [vmem:[%s252 + $0x10] sm:$0xff]
      %v275 = vld [vmem:[%s252 + $0x18] sm:$0xff]
      %v276 = vld [vmem:[%s252 + $0x20] sm:$0xff]
      %v277 = vld [vmem:[%s252 + $0x28] sm:$0xff]
      %v278 = vld [vmem:[%s252 + $0x30] sm:$0xff]
      %v279 = vld [vmem:[%s252 + $0x38] sm:$0xff]
      %vm280 = vcmask 130048
      %v281 = vsel %vm280, %v272, 0.0
      %v282 = vsel %vm280, %v274, 0.0
      %v283 = vadd.f32 %v281, %v282
      %v284 = vsel %vm280, %v276, 0.0
      %v285 = vadd.f32 %v283, %v284
      %v286 = vsel %vm280, %v278, 0.0
      %v287 = vadd.f32 %v285, %v286
      %v288 = vsel %vm280, %v273, 0.0
      %v289 = vsel %vm280, %v275, 0.0
      %v290 = vadd.f32 %v288, %v289
      %v291 = vsel %vm280, %v277, 0.0
      %v292 = vadd.f32 %v290, %v291
      %v293 = vsel %vm280, %v279, 0.0
      %v294 = vadd.f32 %v292, %v293
      %v295 = vpack.c.bf16 %v294, %v287
      %v296 = vld [vmem:[%s247] sm:$0xff]
      %v297 = vld [vmem:[%s247 + $0x8] sm:$0xff]
      %v298 = vld [vmem:[%s247 + $0x10] sm:$0xff]
      %v299 = vld [vmem:[%s247 + $0x18] sm:$0xff]
      %v300 = vpack.c.bf16 %v297, %v296
      %v301 = vpack.c.bf16 %v299, %v298
      %v302 = vld [vmem:[%s257] sm:$0xff]
      %v303 = vld [vmem:[%s257 + $0x8] sm:$0xff]
      %v304 = vpack.c.bf16 %v303, %v302
      %v306 = vsel %vm280, %v300, 0
      %v309 = vsel %vm280, %v301, 0
      %311 = vmatprep.subr.bf16.mxu0 0
      %312 = vmatpush1.bf16.msra.mxu0 0
      %313 = vmatprep.subr.bf16.mxu0 0
      %314 = vmatpush1.bf16.msra.mxu0 0
      %315 = vmatprep.subr.bf16.mxu0 0
      %316 = vmatpush1.bf16.msra.mxu0 0
      %317 = vmatprep.subr.bf16.mxu0 0
      %318 = vmatpush1.bf16.msra.mxu0 0
      %319 = vmatprep.subr.bf16.mxu0 0
      %320 = vmatpush1.bf16.msra.mxu0 0
      %321 = vmatprep.subr.bf16.mxu0 0
      %322 = vmatpush1.bf16.msra.mxu0 0
      %323 = vmatprep.subr.bf16.mxu0 0
      %324 = vmatpush1.bf16.msra.mxu0 0
      %325 = vmatprep.subr.bf16.mxu0 0
      %326 = vmatpush1.bf16.msra.mxu0 %v304
      %327 = vmatprep.subr.bf16.mxu0 0
      %328 = vmatpush2.bf16.msra.mxu0 0
      %329 = vmatprep.subr.bf16.mxu0 0
      %330 = vmatpush2.bf16.msra.mxu0 0
      %331 = vmatprep.subr.bf16.mxu0 0
      %332 = vmatpush2.bf16.msra.mxu0 0
      %333 = vmatprep.subr.bf16.mxu0 0
      %334 = vmatpush2.bf16.msra.mxu0 0
      %335 = vmatprep.subr.bf16.mxu0 0
      %336 = vmatpush2.bf16.msra.mxu0 0
      %337 = vmatprep.subr.bf16.mxu0 0
      %338 = vmatpush2.bf16.msra.mxu0 0
      %339 = vmatprep.subr.bf16.mxu0 0
      %340 = vmatpush2.bf16.msra.mxu0 0
      %341 = vmatprep.subr.bf16.mxu0 0
      %342 = vmatpush2.bf16.msra.mxu0 0
      %343 = vmatprep.mubr.bf16.mxu0 0
      %344 = vmatmul.mubr.bf16.gmra.mxu0 %v306
      %v345 = vpop.f32.mrf.mxu0
      %v346 = vadd.f32 0.0, %v345
      %v347 = vpop.f32.mrf.mxu0
      %v348 = vpop.f32.mrf.mxu0
      %v349 = vadd.f32 0.0, %v348
      %v350 = vpop.f32.mrf.mxu0
      %351 = vmatprep.mubr.bf16.mxu0 0
      %352 = vmatmul.mubr.bf16.gmra.mxu0 %v309
      %v353 = vpop.f32.mrf.mxu0
      %v354 = vadd.f32 0.0, %v353
      %v355 = vpop.f32.mrf.mxu0
      %v356 = vpop.f32.mrf.mxu0
      %v357 = vadd.f32 0.0, %v356
      %v358 = vpop.f32.mrf.mxu0
      %359 = vdwg.mxu0
      %v360 = vpack.c.bf16 %v349, %v346
      %v361 = vpack.c.bf16 %v357, %v354
      %362 = vxpose.xlu0.c.b16.start [1/8] %v300, 128
      %363 = vxpose.xlu0.c.b16.cont [2/8] 0, 128
      %364 = vxpose.xlu0.c.b16.cont [3/8] 0, 128
      %365 = vxpose.xlu0.c.b16.cont [4/8] 0, 128
      %366 = vxpose.xlu0.c.b16.cont [5/8] 0, 128
      %367 = vxpose.xlu0.c.b16.cont [6/8] 0, 128
      %368 = vxpose.xlu0.c.b16.cont [7/8] 0, 128
      %369 = vxpose.xlu0.c.b16.end [8/8] 0, 128
      %v370 = vpop.trf.xlu0
      %v371 = vpop.trf.xlu0
      %v372 = vpop.trf.xlu0
      %v373 = vpop.trf.xlu0
      %v374 = vpop.trf.xlu0
      %v375 = vpop.trf.xlu0
      %v376 = vpop.trf.xlu0
      %v377 = vpop.trf.xlu0
      %v379 = vsel %vm280, %v370, 0
      %381 = vmatprep.subr.bf16.mxu0 0
      %382 = vmatpush1.bf16.msra.mxu0 0
      %383 = vmatprep.subr.bf16.mxu0 0
      %384 = vmatpush1.bf16.msra.mxu0 0
      %385 = vmatprep.subr.bf16.mxu0 0
      %386 = vmatpush1.bf16.msra.mxu0 0
      %387 = vmatprep.subr.bf16.mxu0 0
      %388 = vmatpush1.bf16.msra.mxu0 0
      %389 = vmatprep.subr.bf16.mxu0 0
      %390 = vmatpush1.bf16.msra.mxu0 0
      %391 = vmatprep.subr.bf16.mxu0 0
      %392 = vmatpush1.bf16.msra.mxu0 0
      %393 = vmatprep.subr.bf16.mxu0 0
      %394 = vmatpush1.bf16.msra.mxu0 0
      %395 = vmatprep.subr.bf16.mxu0 0
      %396 = vmatpush1.bf16.msra.mxu0 %v360
      %397 = vmatprep.subr.bf16.mxu0 0
      %398 = vmatpush2.bf16.msra.mxu0 0
      %399 = vmatprep.subr.bf16.mxu0 0
      %400 = vmatpush2.bf16.msra.mxu0 0
      %401 = vmatprep.subr.bf16.mxu0 0
      %402 = vmatpush2.bf16.msra.mxu0 0
      %403 = vmatprep.subr.bf16.mxu0 0
      %404 = vmatpush2.bf16.msra.mxu0 0
      %405 = vmatprep.subr.bf16.mxu0 0
      %406 = vmatpush2.bf16.msra.mxu0 0
      %407 = vmatprep.subr.bf16.mxu0 0
      %408 = vmatpush2.bf16.msra.mxu0 0
      %409 = vmatprep.subr.bf16.mxu0 0
      %410 = vmatpush2.bf16.msra.mxu0 0
      %411 = vmatprep.subr.bf16.mxu0 0
      %412 = vmatpush2.bf16.msra.mxu0 0
      %413 = vmatprep.mubr.bf16.mxu0 0
      %414 = vmatmul.mubr.bf16.gmra.mxu0 %v379
      %v415 = vpop.f32.mrf.mxu0
      %v416 = vadd.f32 0.0, %v415
      %v417 = vpop.f32.mrf.mxu0
      %v418 = vpop.f32.mrf.mxu0
      %v419 = vadd.f32 0.0, %v418
      %v420 = vpop.f32.mrf.mxu0
      %421 = vdwg.mxu0
      %422 = vxpose.xlu0.c.b16.start [1/8] %v301, 128
      %423 = vxpose.xlu0.c.b16.cont [2/8] 0, 128
      %424 = vxpose.xlu0.c.b16.cont [3/8] 0, 128
      %425 = vxpose.xlu0.c.b16.cont [4/8] 0, 128
      %426 = vxpose.xlu0.c.b16.cont [5/8] 0, 128
      %427 = vxpose.xlu0.c.b16.cont [6/8] 0, 128
      %428 = vxpose.xlu0.c.b16.cont [7/8] 0, 128
      %429 = vxpose.xlu0.c.b16.end [8/8] 0, 128
      %v430 = vpop.trf.xlu0
      %v431 = vpop.trf.xlu0
      %v432 = vpop.trf.xlu0
      %v433 = vpop.trf.xlu0
      %v434 = vpop.trf.xlu0
      %v435 = vpop.trf.xlu0
      %v436 = vpop.trf.xlu0
      %v437 = vpop.trf.xlu0
      %v439 = vsel %vm280, %v430, 0
      %441 = vmatprep.subr.bf16.mxu0 0
      %442 = vmatpush1.bf16.msra.mxu0 0
      %443 = vmatprep.subr.bf16.mxu0 0
      %444 = vmatpush1.bf16.msra.mxu0 0
      %445 = vmatprep.subr.bf16.mxu0 0
      %446 = vmatpush1.bf16.msra.mxu0 0
      %447 = vmatprep.subr.bf16.mxu0 0
      %448 = vmatpush1.bf16.msra.mxu0 0
      %449 = vmatprep.subr.bf16.mxu0 0
      %450 = vmatpush1.bf16.msra.mxu0 0
      %451 = vmatprep.subr.bf16.mxu0 0
      %452 = vmatpush1.bf16.msra.mxu0 0
      %453 = vmatprep.subr.bf16.mxu0 0
      %454 = vmatpush1.bf16.msra.mxu0 0
      %455 = vmatprep.subr.bf16.mxu0 0
      %456 = vmatpush1.bf16.msra.mxu0 %v361
      %457 = vmatprep.subr.bf16.mxu0 0
      %458 = vmatpush2.bf16.msra.mxu0 0
      %459 = vmatprep.subr.bf16.mxu0 0
      %460 = vmatpush2.bf16.msra.mxu0 0
      %461 = vmatprep.subr.bf16.mxu0 0
      %462 = vmatpush2.bf16.msra.mxu0 0
      %463 = vmatprep.subr.bf16.mxu0 0
      %464 = vmatpush2.bf16.msra.mxu0 0
      %465 = vmatprep.subr.bf16.mxu0 0
      %466 = vmatpush2.bf16.msra.mxu0 0
      %467 = vmatprep.subr.bf16.mxu0 0
      %468 = vmatpush2.bf16.msra.mxu0 0
      %469 = vmatprep.subr.bf16.mxu0 0
      %470 = vmatpush2.bf16.msra.mxu0 0
      %471 = vmatprep.subr.bf16.mxu0 0
      %472 = vmatpush2.bf16.msra.mxu0 0
      %473 = vmatprep.mubr.bf16.mxu0 0
      %474 = vmatmul.mubr.bf16.gmra.mxu0 %v439
      %v475 = vpop.f32.mrf.mxu0
      %v476 = vadd.f32 0.0, %v475
      %v477 = vpop.f32.mrf.mxu0
      %v478 = vpop.f32.mrf.mxu0
      %v479 = vadd.f32 0.0, %v478
      %v480 = vpop.f32.mrf.mxu0
      %481 = vdwg.mxu0
      %484 = vrot.lane.b32.xlu0 %v476, 8
      %v485 = vpop.permute.xlu0 %484
      %486 = vrot.lane.b32.xlu0 %v479, 8
      %v487 = vpop.permute.xlu0 %486
      %vm490 = vcmask 64512
      %v491 = vsel %vm490, %v416, %v485
      %v492 = vsel %vm490, %v419, %v487
      %v493 = vpack.c.bf16 %v492, %v491
      %v495 = vsel %vm280, %v295, 0
      %497 = vmatprep.subr.bf16.mxu0 0
      %498 = vmatpush1.bf16.msra.mxu0 0
      %499 = vmatprep.subr.bf16.mxu0 0
      %500 = vmatpush1.bf16.msra.mxu0 0
      %501 = vmatprep.subr.bf16.mxu0 0
      %502 = vmatpush1.bf16.msra.mxu0 0
      %503 = vmatprep.subr.bf16.mxu0 0
      %504 = vmatpush1.bf16.msra.mxu0 0
      %505 = vmatprep.subr.bf16.mxu0 0
      %506 = vmatpush1.bf16.msra.mxu0 0
      %507 = vmatprep.subr.bf16.mxu0 0
      %508 = vmatpush1.bf16.msra.mxu0 0
      %509 = vmatprep.subr.bf16.mxu0 0
      %510 = vmatpush1.bf16.msra.mxu0 0
      %511 = vmatprep.subr.bf16.mxu0 0
      %512 = vmatpush1.bf16.msra.mxu0 %v493
      %513 = vmatprep.subr.bf16.mxu0 0
      %514 = vmatpush2.bf16.msra.mxu0 0
      %515 = vmatprep.subr.bf16.mxu0 0
      %516 = vmatpush2.bf16.msra.mxu0 0
      %517 = vmatprep.subr.bf16.mxu0 0
      %518 = vmatpush2.bf16.msra.mxu0 0
      %519 = vmatprep.subr.bf16.mxu0 0
      %520 = vmatpush2.bf16.msra.mxu0 0
      %521 = vmatprep.subr.bf16.mxu0 0
      %522 = vmatpush2.bf16.msra.mxu0 0
      %523 = vmatprep.subr.bf16.mxu0 0
      %524 = vmatpush2.bf16.msra.mxu0 0
      %525 = vmatprep.subr.bf16.mxu0 0
      %526 = vmatpush2.bf16.msra.mxu0 0
      %527 = vmatprep.subr.bf16.mxu0 0
      %528 = vmatpush2.bf16.msra.mxu0 0
      %529 = vmatprep.mubr.bf16.mxu0 0
      %530 = vmatmul.mubr.bf16.gmra.mxu0 %v495
      %v531 = vpop.f32.mrf.mxu0
      %v532 = vadd.f32 0.0, %v531
      %v533 = vpop.f32.mrf.mxu0
      %v534 = vpop.f32.mrf.mxu0
      %v535 = vadd.f32 0.0, %v534
      %v536 = vpop.f32.mrf.mxu0
      %537 = vdwg.mxu0
      %v538 = vpack.c.bf16 %v535, %v532
      %539 = vmatprep.subr.bf16.mxu0 0
      %540 = vmatpush1.bf16.msra.mxu0 0
      %541 = vmatprep.subr.bf16.mxu0 0
      %542 = vmatpush1.bf16.msra.mxu0 0
      %543 = vmatprep.subr.bf16.mxu0 0
      %544 = vmatpush1.bf16.msra.mxu0 0
      %545 = vmatprep.subr.bf16.mxu0 0
      %546 = vmatpush1.bf16.msra.mxu0 0
      %547 = vmatprep.subr.bf16.mxu0 0
      %548 = vmatpush1.bf16.msra.mxu0 0
      %549 = vmatprep.subr.bf16.mxu0 0
      %550 = vmatpush1.bf16.msra.mxu0 0
      %551 = vmatprep.subr.bf16.mxu0 0
      %552 = vmatpush1.bf16.msra.mxu0 0
      %553 = vmatprep.subr.bf16.mxu0 0
      %554 = vmatpush1.bf16.msra.mxu0 %v538
      %555 = vmatprep.subr.bf16.mxu0 0
      %556 = vmatpush2.bf16.msra.mxu0 0
      %557 = vmatprep.subr.bf16.mxu0 0
      %558 = vmatpush2.bf16.msra.mxu0 0
      %559 = vmatprep.subr.bf16.mxu0 0
      %560 = vmatpush2.bf16.msra.mxu0 0
      %561 = vmatprep.subr.bf16.mxu0 0
      %562 = vmatpush2.bf16.msra.mxu0 0
      %563 = vmatprep.subr.bf16.mxu0 0
      %564 = vmatpush2.bf16.msra.mxu0 0
      %565 = vmatprep.subr.bf16.mxu0 0
      %566 = vmatpush2.bf16.msra.mxu0 0
      %567 = vmatprep.subr.bf16.mxu0 0
      %568 = vmatpush2.bf16.msra.mxu0 0
      %569 = vmatprep.subr.bf16.mxu0 0
      %570 = vmatpush2.bf16.msra.mxu0 0
      %571 = vmatprep.mubr.bf16.mxu0 0
      %572 = vmatmul.mubr.bf16.gmra.mxu0 %v306
      %v573 = vpop.f32.mrf.mxu0
      %v574 = vadd.f32 0.0, %v573
      %v575 = vpop.f32.mrf.mxu0
      %v576 = vpop.f32.mrf.mxu0
      %v577 = vadd.f32 0.0, %v576
      %v578 = vpop.f32.mrf.mxu0
      %579 = vdwg.mxu0
      %581 = vrot.lane.b32.xlu0 %v538, 120
      %v582 = vpop.permute.xlu0 %581
      %584 = vmatprep.subr.bf16.mxu0 0
      %585 = vmatpush1.bf16.msra.mxu0 0
      %586 = vmatprep.subr.bf16.mxu0 0
      %587 = vmatpush1.bf16.msra.mxu0 0
      %588 = vmatprep.subr.bf16.mxu0 0
      %589 = vmatpush1.bf16.msra.mxu0 0
      %590 = vmatprep.subr.bf16.mxu0 0
      %591 = vmatpush1.bf16.msra.mxu0 0
      %592 = vmatprep.subr.bf16.mxu0 0
      %593 = vmatpush1.bf16.msra.mxu0 0
      %594 = vmatprep.subr.bf16.mxu0 0
      %595 = vmatpush1.bf16.msra.mxu0 0
      %596 = vmatprep.subr.bf16.mxu0 0
      %597 = vmatpush1.bf16.msra.mxu0 0
      %598 = vmatprep.subr.bf16.mxu0 0
      %599 = vmatpush1.bf16.msra.mxu0 %v582
      %600 = vmatprep.subr.bf16.mxu0 0
      %601 = vmatpush2.bf16.msra.mxu0 0
      %602 = vmatprep.subr.bf16.mxu0 0
      %603 = vmatpush2.bf16.msra.mxu0 0
      %604 = vmatprep.subr.bf16.mxu0 0
      %605 = vmatpush2.bf16.msra.mxu0 0
      %606 = vmatprep.subr.bf16.mxu0 0
      %607 = vmatpush2.bf16.msra.mxu0 0
      %608 = vmatprep.subr.bf16.mxu0 0
      %609 = vmatpush2.bf16.msra.mxu0 0
      %610 = vmatprep.subr.bf16.mxu0 0
      %611 = vmatpush2.bf16.msra.mxu0 0
      %612 = vmatprep.subr.bf16.mxu0 0
      %613 = vmatpush2.bf16.msra.mxu0 0
      %614 = vmatprep.subr.bf16.mxu0 0
      %615 = vmatpush2.bf16.msra.mxu0 0
      %616 = vmatprep.mubr.bf16.mxu0 0
      %617 = vmatmul.mubr.bf16.gmra.mxu0 %v309
      %v618 = vpop.f32.mrf.mxu0
      %v619 = vadd.f32 0.0, %v618
      %v620 = vpop.f32.mrf.mxu0
      %v621 = vpop.f32.mrf.mxu0
      %v622 = vadd.f32 0.0, %v621
      %v623 = vpop.f32.mrf.mxu0
      %624 = vdwg.mxu0
      %627 = vrot.lane.b32.xlu0 %v619, 8
      %v628 = vpop.permute.xlu0 %627
      %629 = vrot.lane.b32.xlu0 %v622, 8
      %v630 = vpop.permute.xlu0 %629
      %v633 = vsel %vm490, %v574, %v628
      %v634 = vsel %vm490, %v577, %v630
      %v635 = vpack.c.bf16 %v634, %v633
      %v637 = vsel %vm280, %v635, 0
      %639 = vmatprep.subr.bf16.mxu0 0
      %640 = vmatpush1.bf16.msra.mxu0 0
      %641 = vmatprep.subr.bf16.mxu0 0
      %642 = vmatpush1.bf16.msra.mxu0 0
      %643 = vmatprep.subr.bf16.mxu0 0
      %644 = vmatpush1.bf16.msra.mxu0 0
      %645 = vmatprep.subr.bf16.mxu0 0
      %646 = vmatpush1.bf16.msra.mxu0 0
      %647 = vmatprep.subr.bf16.mxu0 0
      %648 = vmatpush1.bf16.msra.mxu0 0
      %649 = vmatprep.subr.bf16.mxu0 0
      %650 = vmatpush1.bf16.msra.mxu0 0
      %651 = vmatprep.subr.bf16.mxu0 0
      %652 = vmatpush1.bf16.msra.mxu0 0
      %653 = vmatprep.subr.bf16.mxu0 0
      %654 = vmatpush1.bf16.msra.mxu0 %v264
      %655 = vmatprep.subr.bf16.mxu0 0
      %656 = vmatpush2.bf16.msra.mxu0 0
      %657 = vmatprep.subr.bf16.mxu0 0
      %658 = vmatpush2.bf16.msra.mxu0 0
      %659 = vmatprep.subr.bf16.mxu0 0
      %660 = vmatpush2.bf16.msra.mxu0 0
      %661 = vmatprep.subr.bf16.mxu0 0
      %662 = vmatpush2.bf16.msra.mxu0 0
      %663 = vmatprep.subr.bf16.mxu0 0
      %664 = vmatpush2.bf16.msra.mxu0 0
      %665 = vmatprep.subr.bf16.mxu0 0
      %666 = vmatpush2.bf16.msra.mxu0 0
      %667 = vmatprep.subr.bf16.mxu0 0
      %668 = vmatpush2.bf16.msra.mxu0 0
      %669 = vmatprep.subr.bf16.mxu0 0
      %670 = vmatpush2.bf16.msra.mxu0 0
      %671 = vmatprep.mubr.bf16.mxu0 0
      %672 = vmatmul.mubr.bf16.gmra.mxu0 %v637
      %v673 = vpop.f32.mrf.mxu0
      %v674 = vadd.f32 %v270, %v673
      %v675 = vpop.f32.mrf.mxu0
      %v676 = vpop.f32.mrf.mxu0
      %v677 = vadd.f32 %v270, %v676
      %v678 = vpop.f32.mrf.mxu0
      %679 = vdwg.mxu0
      %v680 = vsel %vm490, %v674, -inf
      %681 = vmax.xlane.f32.xlu0 %v680
      %v682 = vpop.xlane.xlu0 %681
      %v683 = vsel %vm490, %v677, -inf
      %684 = vmax.xlane.f32.xlu0 %v683
      %v685 = vpop.xlane.xlu0 %684
      %v686 = vsub.f32 %v674, %v682
      %v687 = vsub.f32 %v677, %v685
      %v688 = vmul.f32 %v686, 1.442695
      %v689 = vpow.pop %v688
      %v690 = vmul.f32 %v687, 1.442695
      %v691 = vpow.pop %v690
      %v692 = vsel %vm490, %v689, 0.0
      %693 = vadd.xlane.f32.xlu0 %v692
      %v694 = vpop.xlane.xlu0 %693
      %v695 = vsel %vm490, %v691, 0.0
      %696 = vadd.xlane.f32.xlu0 %v695
      %v697 = vpop.xlane.xlu0 %696
      %v698 = vlog2.pop %v694
      %v699 = vmul.f32 %v698, 0.6931472
      %v700 = vlog2.pop %v697
      %v701 = vmul.f32 %v700, 0.6931472
      %v702 = vadd.f32 %v699, %v682
      %v703 = vadd.f32 %v701, %v685
      %v704 = vsub.f32 %v674, %v702
      %v705 = vsub.f32 %v677, %v703
      %v707 = vrot.slane %v704, 1
      %708 = vrot.lane.b32.xlu0 %v707, 8
      %v709 = vpop.permute.xlu0 %708
      %v711 = vrot.slane %v704, 2
      %712 = vrot.lane.b32.xlu0 %v711, 16
      %v713 = vpop.permute.xlu0 %712
      %v715 = vrot.slane %v704, 3
      %716 = vrot.lane.b32.xlu0 %v715, 24
      %v717 = vpop.permute.xlu0 %716
      %v719 = vrot.slane %v704, 4
      %720 = vrot.lane.b32.xlu0 %v719, 32
      %v721 = vpop.permute.xlu0 %720
      %v723 = vrot.slane %v704, 5
      %724 = vrot.lane.b32.xlu0 %v723, 40
      %v725 = vpop.permute.xlu0 %724
      %v727 = vrot.slane %v704, 6
      %728 = vrot.lane.b32.xlu0 %v727, 48
      %v729 = vpop.permute.xlu0 %728
      %v731 = vrot.slane %v704, 7
      %732 = vrot.lane.b32.xlu0 %v731, 56
      %v733 = vpop.permute.xlu0 %732
      %736 = vrot.lane.b32.xlu0 %v705, 64
      %v737 = vpop.permute.xlu0 %736
      %v739 = vrot.slane %v705, 1
      %740 = vrot.lane.b32.xlu0 %v739, 72
      %v741 = vpop.permute.xlu0 %740
      %v743 = vrot.slane %v705, 2
      %744 = vrot.lane.b32.xlu0 %v743, 80
      %v745 = vpop.permute.xlu0 %744
      %v747 = vrot.slane %v705, 3
      %748 = vrot.lane.b32.xlu0 %v747, 88
      %v749 = vpop.permute.xlu0 %748
      %v751 = vrot.slane %v705, 4
      %752 = vrot.lane.b32.xlu0 %v751, 96
      %v753 = vpop.permute.xlu0 %752
      %v755 = vrot.slane %v705, 5
      %756 = vrot.lane.b32.xlu0 %v755, 104
      %v757 = vpop.permute.xlu0 %756
      %v759 = vrot.slane %v705, 6
      %760 = vrot.lane.b32.xlu0 %v759, 112
      %v761 = vpop.permute.xlu0 %760
      %v763 = vrot.slane %v705, 7
      %764 = vrot.lane.b32.xlu0 %v763, 120
      %v765 = vpop.permute.xlu0 %764
      %v767 = vsel %vm490, %v704, %v709
      %v768 = vsel %vm280, %v767, %v713
      %vm769 = vcmask 195584
      %v770 = vsel %vm769, %v768, %v717
      %vm771 = vcmask 261120
      %v772 = vsel %vm771, %v770, %v721
      %vm773 = vcmask 326656
      %v774 = vsel %vm773, %v772, %v725
      %vm775 = vcmask 392192
      %v776 = vsel %vm775, %v774, %v729
      %vm777 = vcmask 457728
      %v778 = vsel %vm777, %v776, %v733
      %vm779 = vcmask 523264
      %v780 = vsel %vm779, %v778, %v737
      %vm781 = vcmask 588800
      %v782 = vsel %vm781, %v780, %v741
      %vm783 = vcmask 654336
      %v784 = vsel %vm783, %v782, %v745
      %vm785 = vcmask 719872
      %v786 = vsel %vm785, %v784, %v749
      %vm787 = vcmask 785408
      %v788 = vsel %vm787, %v786, %v753
      %vm789 = vcmask 850944
      %v790 = vsel %vm789, %v788, %v757
      %vm791 = vcmask 916480
      %v792 = vsel %vm791, %v790, %v761
      %vm793 = vcmask 982016
      %v794 = vsel %vm793, %v792, %v765
      %795 = vst [vmem:[%s260] sm:$0x1] %v794
      %p796 = scmp.lt.s32.totalorder %s16, 1
      %s797 = scalar_select %p796, %s16, 1
      %s798 = scalar_lea.vmem %s5, %s797
      // Predicated region
      $region41: #{sparse_cocn_forward.1} parent=39 // pred_check
        %p799 = pneg %p154
      $region42: #{sparse_cocn_forward.1} parent=39 // pred_check_branch
        %801 = sbr.rel (%p799) target = $region44
      $region43: #{sparse_cocn_forward.1} parent=39 // pred_region
        _
      $region44: #{sparse_cocn_forward.1} parent=39 // pred_fallthru
        _
    $region40: #{sparse_cocn_forward.1} parent=5 // pred_fallthru
      _
    %p802 = scmp.le.s32.totalorder 2, %s11
    // Predicated region
    $region45: #{sparse_cocn_forward.1} parent=5 // pred_check
      %p803 = pneg %p802
    $region46: #{sparse_cocn_forward.1} parent=5 // pred_check_branch
      %805 = sbr.rel (%p803) target = $region48
    $region47: #{sparse_cocn_forward.1} parent=5 // pred_region
      %s806 = ssub.s32 %s11, 2
      // Predicated region
      $region49: #{sparse_cocn_forward.1} parent=47 // pred_check
        %p807 = pneg %p160
      $region50: #{sparse_cocn_forward.1} parent=47 // pred_check_branch
        %809 = sbr.rel (%p807) target = $region52
      $region51: #{sparse_cocn_forward.1} parent=47 // pred_region
        %p810 = scmp.lt.s32.totalorder %s17, 1
        %s811 = scalar_select %p810, %s17, 1
        %s812 = scalar_lea.vmem %s5, %s811
      $region52: #{sparse_cocn_forward.1} parent=47 // pred_fallthru
        _
    $region48: #{sparse_cocn_forward.1} parent=5 // pred_fallthru
      _
  $region6: #{sparse_cocn_forward.1} parent=0 // loop_footer
    %s15 = sadd.s32 1, %s11
  $region7: #{sparse_cocn_forward.1} parent=0 // loop_footer_branch
    %10 = sbr.rel target = $region3
  $region8: #{sparse_cocn_forward.1} parent=0 // loop_exit
    _

</llo_original>
